<compile_context>
chip_gen: v7x
topology: tpu7x:2x2x1
jax: 0.10.0
libtpu: 0.0.40
codegen_flags: <defaults>
</compile_context>

<pallas_src>
import numpy as np
import jax
import jax.numpy as jnp
from jax.experimental import pallas as pl
from jax.experimental.pallas import tpu as pltpu

_NEG_BIG = -1.0e30  # bias for padded class lanes -> exp() underflows to exactly 0


def _round_up(x, m):
    return ((x + m - 1) // m) * m


def _pad2(x, rows, cols, value=0.0):
    r, c = x.shape
    if r == rows and c == cols:
        return x
    return jnp.pad(x, ((0, rows - r), (0, cols - c)), constant_values=value)


# ---------------------------------------------------------------------------
# Kernels (all dots: bf16 operands, f32 accumulation)
# ---------------------------------------------------------------------------
def _matmul_bf16_kernel(x_ref, w_ref, o_ref):
    # o = X_tile @ W   (used to pre-mix X @ W1 when input_dim > hidden1)
    o_ref[...] = jnp.dot(x_ref[...], w_ref[...],
                         preferred_element_type=jnp.float32).astype(o_ref.dtype)


def _gcn1_fused_kernel(a_ref, x_ref, w1_ref, b1_ref, w2_ref, emb_ref, g_ref):
    # Path d_in_p <= h1_p:  h1 = tanh((A_tile @ X) @ W1 + b1)
    ax = jnp.dot(a_ref[...], x_ref[...], preferred_element_type=jnp.float32)
    pre = jnp.dot(ax.astype(jnp.bfloat16), w1_ref[...],
                  preferred_element_type=jnp.float32) + b1_ref[...]
    h1 = jnp.tanh(pre)
    emb_ref[...] = h1                                   # self.embedding (f32)
    # G = H1 @ W2 fused here (row-wise independent); stored bf16 for call 2.
    g_ref[...] = jnp.dot(h1.astype(jnp.bfloat16), w2_ref[...],
                         preferred_element_type=jnp.float32).astype(g_ref.dtype)


def _gcn1_premixed_kernel(a_ref, xw1_ref, b1_ref, w2_ref, emb_ref, g_ref):
    # Path d_in_p > h1_p:  h1 = tanh(A_tile @ (X @ W1) + b1)  (XW1 precomputed)
    pre = jnp.dot(a_ref[...], xw1_ref[...],
                  preferred_element_type=jnp.float32) + b1_ref[...]
    h1 = jnp.tanh(pre)
    emb_ref[...] = h1
    g_ref[...] = jnp.dot(h1.astype(jnp.bfloat16), w2_ref[...],
                         preferred_element_type=jnp.float32).astype(g_ref.dtype)


def _gcn2_head_kernel(a_ref, g_ref, b2_ref, w3_ref, b3_ref, out_ref):
    # h2 = tanh(A_tile @ G + b2);  probs = softmax(h2 @ W3 + b3)
    h2 = jnp.tanh(jnp.dot(a_ref[...], g_ref[...],
                          preferred_element_type=jnp.float32) + b2_ref[...])
    logits = jnp.dot(h2.astype(jnp.bfloat16), w3_ref[...],
                     preferred_element_type=jnp.float32) + b3_ref[...]
    m = jnp.max(logits, axis=-1, keepdims=True)
    e = jnp.exp(logits - m)
    # exact division (F.softmax parity); padded class lanes (-1e30 bias) -> 0
    out_ref[...] = e / jnp.sum(e, axis=-1, keepdims=True)


# ---------------------------------------------------------------------------
# Wrapper
# ---------------------------------------------------------------------------
def classifer_forward(a_norm, features, params):
    """Fused forward. Returns (probs [N, C], embedding [N, 200])."""
    n, d_in = features.shape
    h1 = params["w1"].shape[1]          # 200
    h2 = params["w2"].shape[1]          # 100
    c = params["w3"].shape[1]           # num_classes

    bf16, f32 = jnp.bfloat16, jnp.float32

    tile_r = min(256, _round_up(n, 8))  # row tile (MXU M fill / pipelining)
    n_p = _round_up(n, tile_r)
    n_tiles = n_p // tile_r
    d_in_p = _round_up(d_in, 128)
    h1_p = _round_up(h1, 128)           # 200 -> 256
    h2_p = _round_up(h2, 128)           # 100 -> 128
    c_p = _round_up(c, 128)             # C   -> 128

    a_p = _pad2(a_norm.astype(f32), n_p, n_p).astype(bf16)
    x_p = _pad2(features.astype(f32), n_p, d_in_p).astype(bf16)
    w1_p = _pad2(params["w1"], d_in_p, h1_p).astype(bf16)
    b1_p = _pad2(params["b1"], 1, h1_p).astype(f32)
    w2_p = _pad2(params["w2"], h1_p, h2_p).astype(bf16)
    b2_p = _pad2(params["b2"], 1, h2_p).astype(f32)
    w3_p = _pad2(params["w3"], h2_p, c_p).astype(bf16)
    b3_p = _pad2(params["b3"], 1, c_p, value=_NEG_BIG).astype(f32)

    def row_spec(shape):
        return pl.BlockSpec(shape, lambda i: (i, 0))

    def full_spec(shape):
        return pl.BlockSpec(shape, lambda i: (0, 0))

    def _cparams(blocks):
        # blocks: list of (block_shape, dtype) DMA'd per grid step.
        need = 2 * sum(int(np.prod(s)) * np.dtype(d).itemsize for s, d in blocks)
        limit = int(min(max(need + (4 << 20), 32 << 20), 64 << 20))
        return pltpu.CompilerParams(dimension_semantics=("parallel",),
                                    vmem_limit_bytes=limit)

    # --- gcn1 contraction order chosen at trace time --------------------
    premix = d_in_p > h1_p  # A @ (X @ W1) is cheaper: precompute XW1 once.
    if premix:
        xw1 = pl.pallas_call(
            _matmul_bf16_kernel,
            grid=(n_tiles,),
            out_shape=jax.ShapeDtypeStruct((n_p, h1_p), bf16),
            in_specs=[row_spec((tile_r, d_in_p)), full_spec((d_in_p, h1_p))],
            out_specs=row_spec((tile_r, h1_p)),
            compiler_params=_cparams([((tile_r, d_in_p), bf16),
                                      ((d_in_p, h1_p), bf16),
                                      ((tile_r, h1_p), bf16)]),
        )(x_p, w1_p)
        gcn1_kernel = _gcn1_premixed_kernel
        gcn1_inputs = (a_p, xw1, b1_p, w2_p)
        gcn1_in_specs = [row_spec((tile_r, n_p)), full_spec((n_p, h1_p)),
                         full_spec((1, h1_p)), full_spec((h1_p, h2_p))]
        gcn1_blocks = [((tile_r, n_p), bf16), ((n_p, h1_p), bf16),
                       ((1, h1_p), f32), ((h1_p, h2_p), bf16),
                       ((tile_r, h1_p), f32), ((tile_r, h2_p), bf16)]
    else:
        gcn1_kernel = _gcn1_fused_kernel
        gcn1_inputs = (a_p, x_p, w1_p, b1_p, w2_p)
        gcn1_in_specs = [row_spec((tile_r, n_p)), full_spec((n_p, d_in_p)),
                         full_spec((d_in_p, h1_p)), full_spec((1, h1_p)),
                         full_spec((h1_p, h2_p))]
        gcn1_blocks = [((tile_r, n_p), bf16), ((n_p, d_in_p), bf16),
                       ((d_in_p, h1_p), bf16), ((1, h1_p), f32),
                       ((h1_p, h2_p), bf16),
                       ((tile_r, h1_p), f32), ((tile_r, h2_p), bf16)]

    # --- call 1: gcn1 (+ H1 @ W2) ----------------------------------------
    emb_p, g_p = pl.pallas_call(
        gcn1_kernel,
        grid=(n_tiles,),
        out_shape=(jax.ShapeDtypeStruct((n_p, h1_p), f32),
                   jax.ShapeDtypeStruct((n_p, h2_p), bf16)),
        in_specs=gcn1_in_specs,
        out_specs=(row_spec((tile_r, h1_p)), row_spec((tile_r, h2_p))),
        compiler_params=_cparams(gcn1_blocks),
    )(*gcn1_inputs)

    # --- call 2: gcn2 + linear + softmax ----------------------------------
    probs_p = pl.pallas_call(
        _gcn2_head_kernel,
        grid=(n_tiles,),
        out_shape=jax.ShapeDtypeStruct((n_p, c_p), f32),
        in_specs=[row_spec((tile_r, n_p)), full_spec((n_p, h2_p)),
                  full_spec((1, h2_p)), full_spec((h2_p, c_p)),
                  full_spec((1, c_p))],
        out_specs=row_spec((tile_r, c_p)),
        compiler_params=_cparams([((tile_r, n_p), bf16), ((n_p, h2_p), bf16),
                                  ((1, h2_p), f32), ((h2_p, c_p), bf16),
                                  ((1, c_p), f32), ((tile_r, c_p), f32)]),
    )(a_p, g_p, b2_p, w3_p, b3_p)

    return probs_p[:n, :c], emb_p[:n, :h1]


# ---------------------------------------------------------------------------
# Parameter / graph construction (plain numpy / JAX glue)
# ---------------------------------------------------------------------------
def sym_norm_adj(adj):
    """pre_adj: D^{-1/2} (A + I) D^{-1/2} with dense numpy (small graph)."""
    adj = adj + np.eye(adj.shape[0], dtype=np.float32)
    rowsum = adj.sum(axis=1)
    d_inv_sqrt = np.power(rowsum, -0.5, out=np.zeros_like(rowsum), where=rowsum > 0)
    d_inv_sqrt[np.isinf(d_inv_sqrt)] = 0.0
    d = np.diag(d_inv_sqrt)
    return (d @ adj @ d).astype(np.float32)


def init_params(key, input_dim, num_classes):
    k1, k2, k3, k4, k5, k6 = jax.random.split(key, 6)

    def linear_init(kw, kb, fan_in, fan_out):
        bound = 1.0 / np.sqrt(fan_in)
        w = jax.random.uniform(kw, (fan_in, fan_out), jnp.float32, -bound, bound)
        b = jax.random.uniform(kb, (1, fan_out), jnp.float32, -bound, bound)
        return w, b

    w1, b1 = linear_init(k1, k2, input_dim, 200)
    w2, b2 = linear_init(k3, k4, 200, 100)
    w3, b3 = linear_init(k5, k6, 100, num_classes)
    return {"w1": w1, "b1": b1, "w2": w2, "b2": b2, "w3": w3, "b3": b3}


def _bf16_matched_reference(a_norm, features, params, premix):
    """Same op/rounding sequence as the kernels (bf16 operands, f32 accum)."""
    bf, f32 = jnp.bfloat16, jnp.float32
    a = a_norm.astype(bf)
    x = features.astype(bf)
    w1, b1 = params["w1"].astype(bf), params["b1"]
    w2, b2 = params["w2"].astype(bf), params["b2"]
    w3, b3 = params["w3"].astype(bf), params["b3"]
    if premix:
        xw1 = jnp.dot(x, w1, preferred_element_type=f32).astype(bf)
        pre1 = jnp.dot(a, xw1, preferred_element_type=f32) + b1
    else:
        ax = jnp.dot(a, x, preferred_element_type=f32)
        pre1 = jnp.dot(ax.astype(bf), w1, preferred_element_type=f32) + b1
    h1 = jnp.tanh(pre1)
    g = jnp.dot(h1.astype(bf), w2, preferred_element_type=f32).astype(bf)
    h2 = jnp.tanh(jnp.dot(a, g, preferred_element_type=f32) + b2)
    logits = jnp.dot(h2.astype(bf), w3, preferred_element_type=f32) + b3
    return jax.nn.softmax(logits, axis=-1), h1


def _run_case(n_nodes, input_dim, num_classes, case_id):
    key = jax.random.fold_in(jax.random.PRNGKey(0), case_id)
    k_feat, k_adj, k_params = jax.random.split(key, 3)

    # Random symmetric binary adjacency (no self loops; pre_adj adds them).
    rand = jax.random.uniform(k_adj, (n_nodes, n_nodes))
    adj_np = np.asarray(rand > 0.7, dtype=np.float32)
    adj_np = np.maximum(adj_np, adj_np.T)
    np.fill_diagonal(adj_np, 0.0)
    a_norm = jnp.asarray(sym_norm_adj(adj_np))

    features = jax.random.normal(k_feat, (n_nodes, input_dim), jnp.float32)
    params = init_params(k_params, input_dim, num_classes)

    probs, embedding = classifer_forward(a_norm, features, params)
    probs, embedding = jax.block_until_ready((probs, embedding))

    # Pure f32 reference (PyTorch forward semantics).
    ref_h1 = jnp.tanh(a_norm @ (features @ params["w1"]) + params["b1"])
    ref_h2 = jnp.tanh(a_norm @ (ref_h1 @ params["w2"]) + params["b2"])
    ref_probs = jax.nn.softmax(ref_h2 @ params["w3"] + params["b3"], axis=-1)

    # bf16-matched reference (same rounding as the kernel) for a tight check.
    premix = _round_up(input_dim, 128) > _round_up(200, 128)
    ref_probs_bf, ref_h1_bf = _bf16_matched_reference(a_norm, features, params, premix)

    assert probs.shape == (n_nodes, num_classes)
    assert embedding.shape == (n_nodes, 200)
    assert bool(jnp.all(jnp.isfinite(probs)))
    # Exact softmax division -> rows sum to 1 at f32 precision.
    assert bool(jnp.allclose(jnp.sum(probs, axis=-1), 1.0, atol=1e-5))
    # Tight: kernel == bf16-matched reference.
    assert bool(jnp.allclose(embedding, ref_h1_bf, atol=2e-3, rtol=2e-3))
    assert bool(jnp.allclose(probs, ref_probs_bf, atol=2e-3, rtol=2e-3))
    # Loose: bf16-fed matmuls vs pure f32 PyTorch-semantics reference.
    assert bool(jnp.allclose(embedding, ref_h1, atol=5e-2, rtol=5e-2))
    assert bool(jnp.allclose(probs, ref_probs, atol=5e-2, rtol=5e-2))


if __name__ == "__main__":
    # Case 1: input_dim (32 -> 128 padded) <= hidden1 (256): (A @ X) @ W1 path.
    _run_case(n_nodes=16, input_dim=32, num_classes=4, case_id=0)
    # Case 2: input_dim (384) > hidden1 (256): premixed X @ W1 path.
    _run_case(n_nodes=24, input_dim=384, num_classes=6, case_id=1)
    print("KERNEL_OK")
</pallas_src>

<mosaic_0001>
module attributes {stable_mosaic.version = 11 : i64} {
  func.func @_gcn1_fused_kernel(%arg0: i32, %arg1: memref<16x16xbf16, #tpu.memory_space<vmem>>, %arg2: memref<16x128xbf16, #tpu.memory_space<vmem>>, %arg3: memref<128x256xbf16, #tpu.memory_space<vmem>>, %arg4: memref<1x256xf32, #tpu.memory_space<vmem>>, %arg5: memref<256x128xbf16, #tpu.memory_space<vmem>>, %arg6: memref<16x256xf32, #tpu.memory_space<vmem>>, %arg7: memref<16x128xbf16, #tpu.memory_space<vmem>>) attributes {dimension_semantics = [#tpu.dimension_semantics<parallel>], iteration_bounds = array<i64: 1>, scalar_prefetch = 0 : i64, scratch_operands = 0 : i64, tpu.core_type = #tpu.core_type<tc>, window_params = [{transform_indices = @transform_0, window_bounds = array<i64: 16, 16>}, {pipeline_mode = #tpu.pipeline_mode<synchronous>, transform_indices = @transform_1, window_bounds = array<i64: 16, 128>}, {pipeline_mode = #tpu.pipeline_mode<synchronous>, transform_indices = @transform_2, window_bounds = array<i64: 128, 256>}, {pipeline_mode = #tpu.pipeline_mode<synchronous>, transform_indices = @transform_3, window_bounds = array<i64: 1, 256>}, {pipeline_mode = #tpu.pipeline_mode<synchronous>, transform_indices = @transform_4, window_bounds = array<i64: 256, 128>}, {transform_indices = @transform_5, window_bounds = array<i64: 16, 256>}, {transform_indices = @transform_6, window_bounds = array<i64: 16, 128>}]} {
    %c0 = arith.constant 0 : index
    %c0_0 = arith.constant 0 : index
    %0 = vector.load %arg1[%c0, %c0_0] : memref<16x16xbf16, #tpu.memory_space<vmem>>, vector<16x16xbf16>
    %c0_1 = arith.constant 0 : index
    %c0_2 = arith.constant 0 : index
    %1 = vector.load %arg2[%c0_1, %c0_2] : memref<16x128xbf16, #tpu.memory_space<vmem>>, vector<16x128xbf16>
    %cst = arith.constant dense<0.000000e+00> : vector<16x128xf32>
    %2 = tpu.matmul %0, %1, %cst {dimension_numbers = #tpu.dot_dimension_numbers<[1], [0], [0], [1], [0, 0, 1, 1], [], []>} : vector<16x16xbf16>, vector<16x128xbf16>, vector<16x128xf32> -> vector<16x128xf32>
    %3 = arith.truncf %2 : vector<16x128xf32> to vector<16x128xbf16>
    %c0_3 = arith.constant 0 : index
    %c0_4 = arith.constant 0 : index
    %4 = vector.load %arg3[%c0_3, %c0_4] : memref<128x256xbf16, #tpu.memory_space<vmem>>, vector<128x256xbf16>
    %cst_5 = arith.constant dense<0.000000e+00> : vector<16x256xf32>
    %5 = tpu.matmul %3, %4, %cst_5 {dimension_numbers = #tpu.dot_dimension_numbers<[1], [0], [0], [1], [0, 0, 1, 1], [], []>} : vector<16x128xbf16>, vector<128x256xbf16>, vector<16x256xf32> -> vector<16x256xf32>
    %c0_6 = arith.constant 0 : index
    %c0_7 = arith.constant 0 : index
    %6 = vector.load %arg4[%c0_6, %c0_7] : memref<1x256xf32, #tpu.memory_space<vmem>>, vector<1x256xf32>
    %7 = vector.broadcast %6 : vector<1x256xf32> to vector<16x256xf32>
    %8 = arith.addf %5, %7 : vector<16x256xf32>
    %9 = math.tanh %8 : vector<16x256xf32>
    %c0_8 = arith.constant 0 : index
    %c0_9 = arith.constant 0 : index
    %10 = vector.load %arg6[%c0_8, %c0_9] : memref<16x256xf32, #tpu.memory_space<vmem>>, vector<16x256xf32>
    tpu.vector_store %arg6[%c0_8, %c0_9], %9 {strides = array<i32>} : memref<16x256xf32, #tpu.memory_space<vmem>>, vector<16x256xf32>,
    %11 = arith.truncf %9 : vector<16x256xf32> to vector<16x256xbf16>
    %c0_10 = arith.constant 0 : index
    %c0_11 = arith.constant 0 : index
    %12 = vector.load %arg5[%c0_10, %c0_11] : memref<256x128xbf16, #tpu.memory_space<vmem>>, vector<256x128xbf16>
    %cst_12 = arith.constant dense<0.000000e+00> : vector<16x128xf32>
    %13 = tpu.matmul %11, %12, %cst_12 {dimension_numbers = #tpu.dot_dimension_numbers<[1], [0], [0], [1], [0, 0, 1, 1], [], []>} : vector<16x256xbf16>, vector<256x128xbf16>, vector<16x128xf32> -> vector<16x128xf32>
    %14 = arith.truncf %13 : vector<16x128xf32> to vector<16x128xbf16>
    %c0_13 = arith.constant 0 : index
    %c0_14 = arith.constant 0 : index
    %15 = vector.load %arg7[%c0_13, %c0_14] : memref<16x128xbf16, #tpu.memory_space<vmem>>, vector<16x128xbf16>
    tpu.vector_store %arg7[%c0_13, %c0_14], %14 {strides = array<i32>} : memref<16x128xbf16, #tpu.memory_space<vmem>>, vector<16x128xbf16>,
    return
  }
  func.func @transform_0(%arg0: i32) -> (i32, i32) {
    %c0_i32 = arith.constant 0 : i32
    %c0_i32_0 = arith.constant 0 : i32
    return %arg0, %c0_i32 : i32, i32
  }
  func.func @transform_1(%arg0: i32) -> (i32, i32) {
    %c0_i32 = arith.constant 0 : i32
    %c0_i32_0 = arith.constant 0 : i32
    %c0_i32_1 = arith.constant 0 : i32
    return %c0_i32, %c0_i32_0 : i32, i32
  }
  func.func @transform_2(%arg0: i32) -> (i32, i32) {
    %c0_i32 = arith.constant 0 : i32
    %c0_i32_0 = arith.constant 0 : i32
    %c0_i32_1 = arith.constant 0 : i32
    return %c0_i32, %c0_i32_0 : i32, i32
  }
  func.func @transform_3(%arg0: i32) -> (i32, i32) {
    %c0_i32 = arith.constant 0 : i32
    %c0_i32_0 = arith.constant 0 : i32
    %c0_i32_1 = arith.constant 0 : i32
    return %c0_i32, %c0_i32_0 : i32, i32
  }
  func.func @transform_4(%arg0: i32) -> (i32, i32) {
    %c0_i32 = arith.constant 0 : i32
    %c0_i32_0 = arith.constant 0 : i32
    %c0_i32_1 = arith.constant 0 : i32
    return %c0_i32, %c0_i32_0 : i32, i32
  }
  func.func @transform_5(%arg0: i32) -> (i32, i32) {
    %c0_i32 = arith.constant 0 : i32
    %c0_i32_0 = arith.constant 0 : i32
    return %arg0, %c0_i32 : i32, i32
  }
  func.func @transform_6(%arg0: i32) -> (i32, i32) {
    %c0_i32 = arith.constant 0 : i32
    %c0_i32_0 = arith.constant 0 : i32
    return %arg0, %c0_i32 : i32, i32
  }
}

</mosaic_0001>

<llo_original>
// kernel: tpu_custom_call.1
$region0: #{tpu_custom_call.1}
  #allocation0 [shape = 'u32[]', space=smem, size = 0x4, offset = 0x4, fixed_abs, tag = 'smem constant byte address 0x4 - core index']
  #allocation1 [shape = 'u32[144,128]{1,0:T(1,128)}', space=vmem, size = 0x12000, scoped, tag = 'internal scratch']
  %s0 = inlined_call_operand.hbm [shape: bf16[16,16], index: 0, kind: input, shape index: {}]
  %s1 = inlined_call_operand.hbm [shape: bf16[16,128], index: 1, kind: input, shape index: {}]
  %s2 = inlined_call_operand.hbm [shape: bf16[128,256], index: 2, kind: input, shape index: {}]
  %s3 = inlined_call_operand.vmem [shape: f32[1,256], index: 3, kind: input, shape index: {}]
  %s4 = inlined_call_operand.hbm [shape: bf16[256,128], index: 4, kind: input, shape index: {}]
  %s5 = inlined_call_operand.hbm [shape: f32[16,256], index: 5, kind: output, shape index: {0}]
  %s6 = inlined_call_operand.hbm [shape: bf16[16,128], index: 6, kind: output, shape index: {1}]
  %7 = xla_tuple %s5, %s6
  %s8 = sld [smem:[#allocation0]]
  $region54: #{tpu_custom_call.1} parent=0
    _
  %s10 = ssub.s32 1, %s8
  %s11 = scalar_select 0, %s10, %s8
  $region1: #{tpu_custom_call.1} parent=0
    #allocation2 [shape = 'u8[4096]{0}', space=vmem, size = 0x1000, scoped, tag = 'input window, operand 0, single buffered']
    #allocation3 [shape = 's32[1]{0}', space=sflag, size = 0x4, scoped, tag = 'scoped memory for tpu_custom_call.1']
    #allocation4 [shape = 's32[1]{0}', space=sflag, size = 0x4, scoped, tag = 'scoped memory for tpu_custom_call.1']
    #allocation5 [shape = 'u8[4096]{0}', space=vmem, size = 0x1000, scoped, tag = 'input window, operand 1, single buffered']
    #allocation6 [shape = 's32[1]{0}', space=sflag, size = 0x4, scoped, tag = 'scoped memory for tpu_custom_call.1']
    #allocation7 [shape = 'u8[65536]{0}', space=vmem, size = 0x10000, scoped, tag = 'input window, operand 2, single buffered']
    #allocation8 [shape = 'u8[65536]{0}', space=vmem, size = 0x10000, scoped, tag = 'input window, operand 4, single buffered']
    #allocation9 [shape = 's32[1]{0}', space=sflag, size = 0x4, scoped, tag = 'scoped memory for tpu_custom_call.1']
    #allocation10 [shape = 'u8[16384]{0}', space=vmem, size = 0x4000, scoped, tag = 'output window, operand 0, single buffered']
    #allocation11 [shape = 'u8[4096]{0}', space=vmem, size = 0x1000, scoped, tag = 'output window, operand 1, single buffered']
    #allocation12 [shape = 's32[1]{0}', space=sflag, size = 0x4, scoped, tag = 'scoped memory for tpu_custom_call.1']
    %12 = vsyncpa [#allocation3], 0
    %13 = vsyncpa [#allocation6], 0
    %14 = vsyncpa [#allocation9], 0
    %15 = vsyncpa [#allocation4], 0
    %16 = vsyncpa [#allocation12], 0
    // Predicated region
    $region2: #{tpu_custom_call.1} parent=1 // pred_check
      _
    $region3: #{tpu_custom_call.1} parent=1 // pred_check_branch
      %18 = sbr.rel (0) target = $region5
    $region4: #{tpu_custom_call.1} parent=1 // pred_region
      %s20 = ssub.s32 128, 128
      %21 = vsyncadd [#allocation3], %s20
      %s22 = sshll.u32 [#allocation2], 4
      %s23 = int_to_ptr.vmem [resolvable:$true] %s22
      %28 = dma.hbm_to_vmem [thread:$0]  %s0, 128, %s23, [#allocation3], 64, 64, 4
    $region5: #{tpu_custom_call.1} parent=1 // pred_fallthru
      _
    // Predicated region
    $region6: #{tpu_custom_call.1} parent=1 // pred_check
      _
    $region7: #{tpu_custom_call.1} parent=1 // pred_check_branch
      %30 = sbr.rel (0) target = $region9
    $region8: #{tpu_custom_call.1} parent=1 // pred_region
      %s32 = ssub.s32 128, 128
      %33 = vsyncadd [#allocation6], %s32
      %s34 = sshll.u32 [#allocation5], 4
      %s35 = int_to_ptr.vmem [resolvable:$true] %s34
      %40 = dma.hbm_to_vmem [thread:$0]  %s1, 128, %s35, [#allocation6], 64, 64, 4
    $region9: #{tpu_custom_call.1} parent=1 // pred_fallthru
      _
    // Predicated region
    $region10: #{tpu_custom_call.1} parent=1 // pred_check
      _
    $region11: #{tpu_custom_call.1} parent=1 // pred_check_branch
      %42 = sbr.rel (0) target = $region13
    $region12: #{tpu_custom_call.1} parent=1 // pred_region
      %s44 = ssub.s32 2048, 2048
      %45 = vsyncadd [#allocation6], %s44
      %s46 = sshll.u32 [#allocation7], 4
      %s47 = int_to_ptr.vmem [resolvable:$true] %s46
      %52 = dma.hbm_to_vmem [thread:$0]  %s2, 2048, %s47, [#allocation6], 128, 128, 8
    $region13: #{tpu_custom_call.1} parent=1 // pred_fallthru
      _
    // Predicated region
    $region14: #{tpu_custom_call.1} parent=1 // pred_check
      _
    $region15: #{tpu_custom_call.1} parent=1 // pred_check_branch
      %54 = sbr.rel (0) target = $region17
    $region16: #{tpu_custom_call.1} parent=1 // pred_region
      _
    $region17: #{tpu_custom_call.1} parent=1 // pred_fallthru
      _
    // Predicated region
    $region18: #{tpu_custom_call.1} parent=1 // pred_check
      _
    $region19: #{tpu_custom_call.1} parent=1 // pred_check_branch
      %56 = sbr.rel (0) target = $region21
    $region20: #{tpu_custom_call.1} parent=1 // pred_region
      %s58 = ssub.s32 2048, 2048
      %59 = vsyncadd [#allocation9], %s58
      %s60 = sshll.u32 [#allocation8], 4
      %s61 = int_to_ptr.vmem [resolvable:$true] %s60
      %66 = dma.hbm_to_vmem [thread:$0]  %s4, 2048, %s61, [#allocation9], 64, 64, 4
    $region21: #{tpu_custom_call.1} parent=1 // pred_fallthru
      _
    // Predicated region
    $region22: #{tpu_custom_call.1} parent=1 // pred_check
      _
    $region23: #{tpu_custom_call.1} parent=1 // pred_check_branch
      %68 = sbr.rel (0) target = $region25
    $region24: #{tpu_custom_call.1} parent=1 // pred_region
      %69 = dma.done [#allocation3], 128
    $region25: #{tpu_custom_call.1} parent=1 // pred_fallthru
      _
    // Predicated region
    $region26: #{tpu_custom_call.1} parent=1 // pred_check
      _
    $region27: #{tpu_custom_call.1} parent=1 // pred_check_branch
      %71 = sbr.rel (0) target = $region29
    $region28: #{tpu_custom_call.1} parent=1 // pred_region
      %72 = dma.done [#allocation6], 128
    $region29: #{tpu_custom_call.1} parent=1 // pred_fallthru
      _
    // Predicated region
    $region30: #{tpu_custom_call.1} parent=1 // pred_check
      _
    $region31: #{tpu_custom_call.1} parent=1 // pred_check_branch
      %74 = sbr.rel (0) target = $region33
    $region32: #{tpu_custom_call.1} parent=1 // pred_region
      %75 = dma.done [#allocation6], 2048
    $region33: #{tpu_custom_call.1} parent=1 // pred_fallthru
      _
    // Predicated region
    $region34: #{tpu_custom_call.1} parent=1 // pred_check
      _
    $region35: #{tpu_custom_call.1} parent=1 // pred_check_branch
      %77 = sbr.rel (0) target = $region37
    $region36: #{tpu_custom_call.1} parent=1 // pred_region
      %78 = dma.done [#allocation9], 2048
    $region37: #{tpu_custom_call.1} parent=1 // pred_fallthru
      _
    %v80 = vld [vmem:[#allocation2] sm:$0xf]
    %v81 = vld [vmem:[#allocation2 + $0x4] sm:$0xf]
    %v82 = vld [vmem:[#allocation5] sm:$0xf]
    %v83 = vld [vmem:[#allocation5 + $0x4] sm:$0xf]
    %v86 = vunpack.c.l.b16 %v80
    %v87 = vunpack.c.l.b16 %v81
    %v88 = vpack.c.b16 %v87, %v86
    %v91 = vunpack.c.l.b16 %v82
    %v92 = vunpack.c.l.b16 %v83
    %v93 = vpack.c.b16 %v92, %v91
    %vm95 = vcmask 130048
    %v97 = vsel %vm95, %v88, 0
    %99 = vmatprep.subr.bf16.mxu0 0
    %100 = vmatpush1.bf16.msra.mxu0 %v93
    %101 = vmatprep.subr.bf16.mxu0 0
    %102 = vmatpush1.bf16.msra.mxu0 0
    %103 = vmatprep.subr.bf16.mxu0 0
    %104 = vmatpush1.bf16.msra.mxu0 0
    %105 = vmatprep.subr.bf16.mxu0 0
    %106 = vmatpush1.bf16.msra.mxu0 0
    %107 = vmatprep.subr.bf16.mxu0 0
    %108 = vmatpush1.bf16.msra.mxu0 0
    %109 = vmatprep.subr.bf16.mxu0 0
    %110 = vmatpush1.bf16.msra.mxu0 0
    %111 = vmatprep.subr.bf16.mxu0 0
    %112 = vmatpush1.bf16.msra.mxu0 0
    %113 = vmatprep.subr.bf16.mxu0 0
    %114 = vmatpush1.bf16.msra.mxu0 0
    %115 = vmatprep.subr.bf16.mxu0 0
    %116 = vmatpush1.bf16.msra.mxu0 0
    %117 = vmatprep.subr.bf16.mxu0 0
    %118 = vmatpush1.bf16.msra.mxu0 0
    %119 = vmatprep.subr.bf16.mxu0 0
    %120 = vmatpush1.bf16.msra.mxu0 0
    %121 = vmatprep.subr.bf16.mxu0 0
    %122 = vmatpush1.bf16.msra.mxu0 0
    %123 = vmatprep.subr.bf16.mxu0 0
    %124 = vmatpush1.bf16.msra.mxu0 0
    %125 = vmatprep.subr.bf16.mxu0 0
    %126 = vmatpush1.bf16.msra.mxu0 0
    %127 = vmatprep.subr.bf16.mxu0 0
    %128 = vmatpush1.bf16.msra.mxu0 0
    %129 = vmatprep.subr.bf16.mxu0 0
    %130 = vmatpush1.bf16.msra.mxu0 0
    %131 = vmatprep.mubr.bf16.mxu0 0
    %132 = vmatmul.mubr.bf16.gmra.mrb[0].mxu0 %v97
    %v133 = vpop.f32.mrb[0].mxu0
    %v134 = vadd.f32 0.0, %v133
    %v135 = vpop.f32.mrb[0].mxu0
    %v136 = vpop.f32.mrb[0].mxu0
    %v137 = vadd.f32 0.0, %v136
    %v138 = vpop.f32.mrb[0].mxu0
    %139 = vdwg.mxu0
    %v140 = vpack.c.bf16 %v137, %v134
    %v141 = vld [vmem:[#allocation7] sm:$0xff]
    %v142 = vld [vmem:[#allocation7 + $0x8] sm:$0xff]
    %v143 = vld [vmem:[#allocation7 + $0x10] sm:$0xff]
    %v144 = vld [vmem:[#allocation7 + $0x18] sm:$0xff]
    %v145 = vld [vmem:[#allocation7 + $0x20] sm:$0xff]
    %v146 = vld [vmem:[#allocation7 + $0x28] sm:$0xff]
    %v147 = vld [vmem:[#allocation7 + $0x30] sm:$0xff]
    %v148 = vld [vmem:[#allocation7 + $0x38] sm:$0xff]
    %v149 = vld [vmem:[#allocation7 + $0x40] sm:$0xff]
    %v150 = vld [vmem:[#allocation7 + $0x48] sm:$0xff]
    %v151 = vld [vmem:[#allocation7 + $0x50] sm:$0xff]
    %v152 = vld [vmem:[#allocation7 + $0x58] sm:$0xff]
    %v153 = vld [vmem:[#allocation7 + $0x60] sm:$0xff]
    %v154 = vld [vmem:[#allocation7 + $0x68] sm:$0xff]
    %v155 = vld [vmem:[#allocation7 + $0x70] sm:$0xff]
    %v156 = vld [vmem:[#allocation7 + $0x78] sm:$0xff]
    %v157 = vld [vmem:[%s3] sm:$0x3]
    %v159 = vlaneseq
    %v160 = vshrl.u32 %v159, 7
    %v161 = vsub.s32 0, %v160
    %v162 = vrot.slane %v157, %v161
    %v163 = vlaneseq
    %v164 = vshrl.u32 %v163, 7
    %v165 = vsub.s32 1, %v164
    %v166 = vrot.slane %v157, %v165
    %v185 = vunpack.c.l.b16 %v141
    %v186 = vunpack.c.h.b16 %v141
    %v187 = vunpack.c.l.b16 %v142
    %v188 = vunpack.c.h.b16 %v142
    %v189 = vunpack.c.l.b16 %v143
    %v190 = vunpack.c.h.b16 %v143
    %v191 = vunpack.c.l.b16 %v144
    %v192 = vunpack.c.h.b16 %v144
    %v193 = vunpack.c.l.b16 %v145
    %v194 = vunpack.c.h.b16 %v145
    %v195 = vunpack.c.l.b16 %v146
    %v196 = vunpack.c.h.b16 %v146
    %v197 = vunpack.c.l.b16 %v147
    %v198 = vunpack.c.h.b16 %v147
    %v199 = vunpack.c.l.b16 %v148
    %v200 = vunpack.c.h.b16 %v148
    %v201 = vunpack.c.l.b16 %v149
    %v202 = vunpack.c.h.b16 %v149
    %v203 = vunpack.c.l.b16 %v150
    %v204 = vunpack.c.h.b16 %v150
    %v205 = vunpack.c.l.b16 %v151
    %v206 = vunpack.c.h.b16 %v151
    %v207 = vunpack.c.l.b16 %v152
    %v208 = vunpack.c.h.b16 %v152
    %v209 = vunpack.c.l.b16 %v153
    %v210 = vunpack.c.h.b16 %v153
    %v211 = vunpack.c.l.b16 %v154
    %v212 = vunpack.c.h.b16 %v154
    %v213 = vunpack.c.l.b16 %v155
    %v214 = vunpack.c.h.b16 %v155
    %v215 = vunpack.c.l.b16 %v156
    %v216 = vunpack.c.h.b16 %v156
    %v217 = vpack.c.b16 %v187, %v185
    %v218 = vpack.c.b16 %v188, %v186
    %v219 = vpack.c.b16 %v191, %v189
    %v220 = vpack.c.b16 %v192, %v190
    %v221 = vpack.c.b16 %v195, %v193
    %v222 = vpack.c.b16 %v196, %v194
    %v223 = vpack.c.b16 %v199, %v197
    %v224 = vpack.c.b16 %v200, %v198
    %v225 = vpack.c.b16 %v203, %v201
    %v226 = vpack.c.b16 %v204, %v202
    %v227 = vpack.c.b16 %v207, %v205
    %v228 = vpack.c.b16 %v208, %v206
    %v229 = vpack.c.b16 %v211, %v209
    %v230 = vpack.c.b16 %v212, %v210
    %v231 = vpack.c.b16 %v215, %v213
    %v232 = vpack.c.b16 %v216, %v214
    %249 = vmatprep.subr.bf16.mxu0 %v218
    %250 = vmatpush1.bf16.msra.mxu0 %v217
    %251 = vmatprep.subr.bf16.mxu0 %v220
    %252 = vmatpush1.bf16.msra.mxu0 %v219
    %253 = vmatprep.subr.bf16.mxu0 %v222
    %254 = vmatpush1.bf16.msra.mxu0 %v221
    %255 = vmatprep.subr.bf16.mxu0 %v224
    %256 = vmatpush1.bf16.msra.mxu0 %v223
    %257 = vmatprep.subr.bf16.mxu0 %v226
    %258 = vmatpush1.bf16.msra.mxu0 %v225
    %259 = vmatprep.subr.bf16.mxu0 %v228
    %260 = vmatpush1.bf16.msra.mxu0 %v227
    %261 = vmatprep.subr.bf16.mxu0 %v230
    %262 = vmatpush1.bf16.msra.mxu0 %v229
    %263 = vmatprep.subr.bf16.mxu0 %v232
    %264 = vmatpush1.bf16.msra.mxu0 %v231
    %265 = vmatprep.subr.bf16.mxu0 0
    %266 = vmatpush1.bf16.msra.mxu0 0
    %267 = vmatprep.subr.bf16.mxu0 0
    %268 = vmatpush1.bf16.msra.mxu0 0
    %269 = vmatprep.subr.bf16.mxu0 0
    %270 = vmatpush1.bf16.msra.mxu0 0
    %271 = vmatprep.subr.bf16.mxu0 0
    %272 = vmatpush1.bf16.msra.mxu0 0
    %273 = vmatprep.subr.bf16.mxu0 0
    %274 = vmatpush1.bf16.msra.mxu0 0
    %275 = vmatprep.subr.bf16.mxu0 0
    %276 = vmatpush1.bf16.msra.mxu0 0
    %277 = vmatprep.subr.bf16.mxu0 0
    %278 = vmatpush1.bf16.msra.mxu0 0
    %279 = vmatprep.subr.bf16.mxu0 0
    %280 = vmatpush1.bf16.msra.mxu0 0
    %281 = vmatprep.mubr.bf16.mxu0 0
    %282 = vmatmul.mubr.bf16.gmra.mrb[0].mxu0 %v140
    %v283 = vpop.f32.mrb[0].mxu0
    %v284 = vadd.f32 %v162, %v283
    %v285 = vpop.f32.mrb[0].mxu0
    %v286 = vadd.f32 %v166, %v285
    %v287 = vpop.f32.mrb[0].mxu0
    %v288 = vadd.f32 %v162, %v287
    %v289 = vpop.f32.mrb[0].mxu0
    %v290 = vadd.f32 %v166, %v289
    %291 = vdwg.mxu0
    %v292 = vtanh.pop %v284
    %v293 = vtanh.pop %v286
    %v294 = vtanh.pop %v288
    %v295 = vtanh.pop %v290
    %296 = vst [vmem:[#allocation10] sm:$0xff] %v292
    %297 = vst [vmem:[#allocation10 + $0x8] sm:$0xff] %v293
    %298 = vst [vmem:[#allocation10 + $0x10] sm:$0xff] %v294
    %299 = vst [vmem:[#allocation10 + $0x18] sm:$0xff] %v295
    %v300 = vpack.c.bf16 %v294, %v292
    %v301 = vpack.c.bf16 %v295, %v293
    %v302 = vld [vmem:[#allocation8] sm:$0xf]
    %v303 = vld [vmem:[#allocation8 + $0x4] sm:$0xf]
    %v304 = vld [vmem:[#allocation8 + $0x8] sm:$0xf]
    %v305 = vld [vmem:[#allocation8 + $0xc] sm:$0xf]
    %v306 = vld [vmem:[#allocation8 + $0x10] sm:$0xf]
    %v307 = vld [vmem:[#allocation8 + $0x14] sm:$0xf]
    %v308 = vld [vmem:[#allocation8 + $0x18] sm:$0xf]
    %v309 = vld [vmem:[#allocation8 + $0x1c] sm:$0xf]
    %v310 = vld [vmem:[#allocation8 + $0x20] sm:$0xf]
    %v311 = vld [vmem:[#allocation8 + $0x24] sm:$0xf]
    %v312 = vld [vmem:[#allocation8 + $0x28] sm:$0xf]
    %v313 = vld [vmem:[#allocation8 + $0x2c] sm:$0xf]
    %v314 = vld [vmem:[#allocation8 + $0x30] sm:$0xf]
    %v315 = vld [vmem:[#allocation8 + $0x34] sm:$0xf]
    %v316 = vld [vmem:[#allocation8 + $0x38] sm:$0xf]
    %v317 = vld [vmem:[#allocation8 + $0x3c] sm:$0xf]
    %v318 = vld [vmem:[#allocation8 + $0x40] sm:$0xf]
    %v319 = vld [vmem:[#allocation8 + $0x44] sm:$0xf]
    %v320 = vld [vmem:[#allocation8 + $0x48] sm:$0xf]
    %v321 = vld [vmem:[#allocation8 + $0x4c] sm:$0xf]
    %v322 = vld [vmem:[#allocation8 + $0x50] sm:$0xf]
    %v323 = vld [vmem:[#allocation8 + $0x54] sm:$0xf]
    %v324 = vld [vmem:[#allocation8 + $0x58] sm:$0xf]
    %v325 = vld [vmem:[#allocation8 + $0x5c] sm:$0xf]
    %v326 = vld [vmem:[#allocation8 + $0x60] sm:$0xf]
    %v327 = vld [vmem:[#allocation8 + $0x64] sm:$0xf]
    %v328 = vld [vmem:[#allocation8 + $0x68] sm:$0xf]
    %v329 = vld [vmem:[#allocation8 + $0x6c] sm:$0xf]
    %v330 = vld [vmem:[#allocation8 + $0x70] sm:$0xf]
    %v331 = vld [vmem:[#allocation8 + $0x74] sm:$0xf]
    %v332 = vld [vmem:[#allocation8 + $0x78] sm:$0xf]
    %v333 = vld [vmem:[#allocation8 + $0x7c] sm:$0xf]
    %v366 = vunpack.c.l.b16 %v302
    %v367 = vunpack.c.l.b16 %v303
    %v368 = vunpack.c.l.b16 %v304
    %v369 = vunpack.c.l.b16 %v305
    %v370 = vunpack.c.l.b16 %v306
    %v371 = vunpack.c.l.b16 %v307
    %v372 = vunpack.c.l.b16 %v308
    %v373 = vunpack.c.l.b16 %v309
    %v374 = vunpack.c.l.b16 %v310
    %v375 = vunpack.c.l.b16 %v311
    %v376 = vunpack.c.l.b16 %v312
    %v377 = vunpack.c.l.b16 %v313
    %v378 = vunpack.c.l.b16 %v314
    %v379 = vunpack.c.l.b16 %v315
    %v380 = vunpack.c.l.b16 %v316
    %v381 = vunpack.c.l.b16 %v317
    %v382 = vunpack.c.l.b16 %v318
    %v383 = vunpack.c.l.b16 %v319
    %v384 = vunpack.c.l.b16 %v320
    %v385 = vunpack.c.l.b16 %v321
    %v386 = vunpack.c.l.b16 %v322
    %v387 = vunpack.c.l.b16 %v323
    %v388 = vunpack.c.l.b16 %v324
    %v389 = vunpack.c.l.b16 %v325
    %v390 = vunpack.c.l.b16 %v326
    %v391 = vunpack.c.l.b16 %v327
    %v392 = vunpack.c.l.b16 %v328
    %v393 = vunpack.c.l.b16 %v329
    %v394 = vunpack.c.l.b16 %v330
    %v395 = vunpack.c.l.b16 %v331
    %v396 = vunpack.c.l.b16 %v332
    %v397 = vunpack.c.l.b16 %v333
    %v398 = vpack.c.b16 %v367, %v366
    %v399 = vpack.c.b16 %v369, %v368
    %v400 = vpack.c.b16 %v371, %v370
    %v401 = vpack.c.b16 %v373, %v372
    %v402 = vpack.c.b16 %v375, %v374
    %v403 = vpack.c.b16 %v377, %v376
    %v404 = vpack.c.b16 %v379, %v378
    %v405 = vpack.c.b16 %v381, %v380
    %v406 = vpack.c.b16 %v383, %v382
    %v407 = vpack.c.b16 %v385, %v384
    %v408 = vpack.c.b16 %v387, %v386
    %v409 = vpack.c.b16 %v389, %v388
    %v410 = vpack.c.b16 %v391, %v390
    %v411 = vpack.c.b16 %v393, %v392
    %v412 = vpack.c.b16 %v395, %v394
    %v413 = vpack.c.b16 %v397, %v396
    %430 = vmatprep.subr.bf16.mxu0 0
    %431 = vmatpush1.bf16.msra.mxu0 %v398
    %432 = vmatprep.subr.bf16.mxu0 0
    %433 = vmatpush1.bf16.msra.mxu0 %v399
    %434 = vmatprep.subr.bf16.mxu0 0
    %435 = vmatpush1.bf16.msra.mxu0 %v400
    %436 = vmatprep.subr.bf16.mxu0 0
    %437 = vmatpush1.bf16.msra.mxu0 %v401
    %438 = vmatprep.subr.bf16.mxu0 0
    %439 = vmatpush1.bf16.msra.mxu0 %v402
    %440 = vmatprep.subr.bf16.mxu0 0
    %441 = vmatpush1.bf16.msra.mxu0 %v403
    %442 = vmatprep.subr.bf16.mxu0 0
    %443 = vmatpush1.bf16.msra.mxu0 %v404
    %444 = vmatprep.subr.bf16.mxu0 0
    %445 = vmatpush1.bf16.msra.mxu0 %v405
    %446 = vmatprep.subr.bf16.mxu0 0
    %447 = vmatpush1.bf16.msra.mxu0 %v406
    %448 = vmatprep.subr.bf16.mxu0 0
    %449 = vmatpush1.bf16.msra.mxu0 %v407
    %450 = vmatprep.subr.bf16.mxu0 0
    %451 = vmatpush1.bf16.msra.mxu0 %v408
    %452 = vmatprep.subr.bf16.mxu0 0
    %453 = vmatpush1.bf16.msra.mxu0 %v409
    %454 = vmatprep.subr.bf16.mxu0 0
    %455 = vmatpush1.bf16.msra.mxu0 %v410
    %456 = vmatprep.subr.bf16.mxu0 0
    %457 = vmatpush1.bf16.msra.mxu0 %v411
    %458 = vmatprep.subr.bf16.mxu0 0
    %459 = vmatpush1.bf16.msra.mxu0 %v412
    %460 = vmatprep.subr.bf16.mxu0 0
    %461 = vmatpush1.bf16.msra.mxu0 %v413
    %462 = vmatprep.mubr.bf16.mxu0 %v301
    %463 = vmatmul.mubr.bf16.gmra.mrb[0].mxu0 %v300
    %v464 = vpop.f32.mrb[0].mxu0
    %v465 = vadd.f32 0.0, %v464
    %v466 = vpop.f32.mrb[0].mxu0
    %v467 = vpop.f32.mrb[0].mxu0
    %v468 = vadd.f32 0.0, %v467
    %v469 = vpop.f32.mrb[0].mxu0
    %470 = vdwg.mxu0
    %v471 = vpack.c.bf16 %v468, %v465
    %v473 = vunpack.c.l.b16 %v471
    %v474 = vunpack.c.h.b16 %v471
    %v475 = vpack.c.b16 %v473, %v473
    %v476 = vpack.c.b16 %v474, %v474
    %479 = vst [vmem:[#allocation11] sm:$0xf] %v475
    %480 = vst [vmem:[#allocation11 + $0x4] sm:$0xf] %v476
    // Predicated region
    $region38: #{tpu_custom_call.1} parent=1 // pred_check
      _
    $region39: #{tpu_custom_call.1} parent=1 // pred_check_branch
      %482 = sbr.rel (0) target = $region41
    $region40: #{tpu_custom_call.1} parent=1 // pred_region
      %s484 = ssub.s32 512, 512
      %485 = vsyncadd [#allocation4], %s484
      %s486 = sshll.u32 [#allocation10], 4
      %s487 = int_to_ptr.vmem [resolvable:$true] %s486
      %492 = dma.vmem_to_hbm [thread:$0]  %s487, 512, %s5, [#allocation4], 256, 256, 16
    $region41: #{tpu_custom_call.1} parent=1 // pred_fallthru
      _
    // Predicated region
    $region42: #{tpu_custom_call.1} parent=1 // pred_check
      _
    $region43: #{tpu_custom_call.1} parent=1 // pred_check_branch
      %494 = sbr.rel (0) target = $region45
    $region44: #{tpu_custom_call.1} parent=1 // pred_region
      %s496 = ssub.s32 128, 128
      %497 = vsyncadd [#allocation12], %s496
      %s498 = sshll.u32 [#allocation11], 4
      %s499 = int_to_ptr.vmem [resolvable:$true] %s498
      %504 = dma.vmem_to_hbm [thread:$0]  %s499, 128, %s6, [#allocation12], 64, 64, 4
    $region45: #{tpu_custom_call.1} parent=1 // pred_fallthru
      _
    // Predicated region
    $region46: #{tpu_custom_call.1} parent=1 // pred_check
      _
    $region47: #{tpu_custom_call.1} parent=1 // pred_check_branch
      %506 = sbr.rel (0) target = $region49
    $region48: #{tpu_custom_call.1} parent=1 // pred_region
      %507 = dma.done [#allocation4], 512
    $region49: #{tpu_custom_call.1} parent=1 // pred_fallthru
      _
    // Predicated region
    $region50: #{tpu_custom_call.1} parent=1 // pred_check
      _
    $region51: #{tpu_custom_call.1} parent=1 // pred_check_branch
      %509 = sbr.rel (0) target = $region53
    $region52: #{tpu_custom_call.1} parent=1 // pred_region
      %510 = dma.done [#allocation12], 128
    $region53: #{tpu_custom_call.1} parent=1 // pred_fallthru
      _
    %511 = vsyncpa [#allocation3], 1
    %512 = vsyncpa [#allocation6], 1
    %513 = vsyncpa [#allocation9], 1
    %514 = vsyncpa [#allocation4], 1
    %515 = vsyncpa [#allocation12], 1

</llo_original>
